<compile_context>
chip_gen: v5e
topology: v5e:2x2
jax: 0.10.0
libtpu: 0.0.40
codegen_flags: <defaults>
</compile_context>

<pallas_src>
import functools

import jax
import jax.numpy as jnp
from jax.experimental import pallas as pl
from jax.experimental.pallas import tpu as pltpu


def _instance_norm_kernel(x_ref, s_ref, b_ref, *out_refs, eps, inv_n):
    # x_ref: (tm, L), s_ref/b_ref: (tm, 1), out_refs[0]: (tm, L)
    x = x_ref[...].astype(jnp.float32)
    mean = jnp.sum(x, axis=1, keepdims=True) * inv_n          # (tm, 1)
    xc = x - mean
    var = jnp.sum(xc * xc, axis=1, keepdims=True) * inv_n      # biased variance
    inv_std = jax.lax.rsqrt(var + eps)                         # EUP rsqrt
    o_ref = out_refs[0]
    o_ref[...] = ((xc * inv_std) * s_ref[...] + b_ref[...]).astype(o_ref.dtype)
    if len(out_refs) == 3:                                     # return_mean path
        out_refs[1][...] = mean.astype(out_refs[1].dtype)
        out_refs[2][...] = jnp.sqrt(var + eps).astype(out_refs[2].dtype)


def my_instance_norm(x, scale, bias, *, eps=1e-5, return_mean=False):
    """Pallas forward for MyInstanceNorm.

    x:     (N, C, H, W) float32
    scale: (1, C, 1, 1) float32
    bias:  (1, C, 1, 1) float32
    """
    N, C, H, W = x.shape
    M = N * C
    L = H * W

    x2 = x.reshape(M, L)
    s_rows = jnp.broadcast_to(scale.reshape(1, C), (N, C)).reshape(M, 1).astype(jnp.float32)
    b_rows = jnp.broadcast_to(bias.reshape(1, C), (N, C)).reshape(M, 1).astype(jnp.float32)

    # Row-tile size: multiple of 8 sublanes, x block capped at ~2 MiB so the
    # pipelined working set stays under the scoped VMEM default on all chips.
    row_bytes = L * 4
    tm = max(8, min(1024, (2 * 1024 * 1024) // max(row_bytes, 1)))
    tm = max(8, (tm // 8) * 8)
    m_ceil8 = -(-M // 8) * 8
    tm = min(tm, m_ceil8)

    n_tiles = -(-M // tm)
    Mp = n_tiles * tm
    if Mp != M:
        # Pad with benign rows (zeros normalize to zeros; scale=1/bias=0).
        x2 = jnp.pad(x2, ((0, Mp - M), (0, 0)))
        s_rows = jnp.pad(s_rows, ((0, Mp - M), (0, 0)), constant_values=1.0)
        b_rows = jnp.pad(b_rows, ((0, Mp - M), (0, 0)))

    kernel = functools.partial(_instance_norm_kernel, eps=float(eps), inv_n=1.0 / float(L))

    in_specs = [
        pl.BlockSpec((tm, L), lambda i: (i, 0)),
        pl.BlockSpec((tm, 1), lambda i: (i, 0)),
        pl.BlockSpec((tm, 1), lambda i: (i, 0)),
    ]
    if return_mean:
        out_shape = (
            jax.ShapeDtypeStruct((Mp, L), x.dtype),
            jax.ShapeDtypeStruct((Mp, 1), jnp.float32),
            jax.ShapeDtypeStruct((Mp, 1), jnp.float32),
        )
        out_specs = (
            pl.BlockSpec((tm, L), lambda i: (i, 0)),
            pl.BlockSpec((tm, 1), lambda i: (i, 0)),
            pl.BlockSpec((tm, 1), lambda i: (i, 0)),
        )
    else:
        out_shape = jax.ShapeDtypeStruct((Mp, L), x.dtype)
        out_specs = pl.BlockSpec((tm, L), lambda i: (i, 0))

    result = pl.pallas_call(
        kernel,
        out_shape=out_shape,
        grid_spec=pltpu.PrefetchScalarGridSpec(
            num_scalar_prefetch=0,
            grid=(n_tiles,),
            in_specs=in_specs,
            out_specs=out_specs,
        ),
        compiler_params=pltpu.CompilerParams(
            dimension_semantics=("parallel",),
        ),
    )(x2, s_rows, b_rows)

    if return_mean:
        y2, mean2, std2 = result
        y = y2[:M].reshape(N, C, H, W)
        mean = mean2[:M].reshape(N, C, 1, 1)
        std = std2[:M].reshape(N, C, 1, 1)
        return y, mean, std
    else:
        return result[:M].reshape(N, C, H, W)


def _ref_instance_norm(x, scale, bias, eps=1e-5):
    N, C, H, W = x.shape
    xf = x.reshape(N, C, -1)
    mean = xf.mean(axis=2).reshape(N, C, 1, 1)
    var = xf.var(axis=2).reshape(N, C, 1, 1)          # biased (ddof=0)
    std = jnp.sqrt(var + eps)
    y = (x - mean) / std * scale + bias
    return y, mean, std


if __name__ == "__main__":
    N, C, H, W = 2, 4, 16, 16
    eps = 1e-5

    key = jax.random.PRNGKey(0)
    kx, ks = jax.random.split(key)

    # Parameter init mirroring the module: scale = randn*0.02 + 1, bias = 0.
    scale = jax.random.normal(ks, (1, C, 1, 1), dtype=jnp.float32) * 0.02 + 1.0
    bias = jnp.zeros((1, C, 1, 1), dtype=jnp.float32)
    x = jax.random.normal(kx, (N, C, H, W), dtype=jnp.float32)

    # Default path (return_mean=False).
    out = my_instance_norm(x, scale, bias, eps=eps, return_mean=False)
    out = jax.block_until_ready(out)

    ref_y, ref_mean, ref_std = _ref_instance_norm(x, scale, bias, eps=eps)
    assert out.shape == (N, C, H, W)
    assert jnp.allclose(out, ref_y, atol=1e-4, rtol=1e-4), "output mismatch vs reference"

    # return_mean=True path.
    out2, mean2, std2 = my_instance_norm(x, scale, bias, eps=eps, return_mean=True)
    jax.block_until_ready(out2)
    assert jnp.allclose(out2, ref_y, atol=1e-4, rtol=1e-4), "output mismatch (return_mean)"
    assert jnp.allclose(mean2, ref_mean, atol=1e-5, rtol=1e-5), "mean mismatch"
    assert jnp.allclose(std2, ref_std, atol=1e-5, rtol=1e-5), "std mismatch"

    print("KERNEL_OK")
</pallas_src>

<mosaic_0001>
module attributes {stable_mosaic.version = 11 : i64} {
  func.func @_instance_norm_kernel(%arg0: i32, %arg1: memref<8x256xf32, #tpu.memory_space<vmem>>, %arg2: memref<8x1xf32, #tpu.memory_space<vmem>>, %arg3: memref<8x1xf32, #tpu.memory_space<vmem>>, %arg4: memref<8x256xf32, #tpu.memory_space<vmem>>) attributes {dimension_semantics = [#tpu.dimension_semantics<parallel>], iteration_bounds = array<i64: 1>, scalar_prefetch = 0 : i64, scratch_operands = 0 : i64, tpu.core_type = #tpu.core_type<tc>, window_params = [{transform_indices = @transform_0, window_bounds = array<i64: 8, 256>}, {transform_indices = @transform_1, window_bounds = array<i64: 8, 1>}, {transform_indices = @transform_2, window_bounds = array<i64: 8, 1>}, {transform_indices = @transform_3, window_bounds = array<i64: 8, 256>}]} {
    %c0 = arith.constant 0 : index
    %c0_0 = arith.constant 0 : index
    %0 = vector.load %arg1[%c0, %c0_0] : memref<8x256xf32, #tpu.memory_space<vmem>>, vector<8x256xf32>
    %cst = arith.constant dense<0.000000e+00> : vector<8xf32>
    %1 = vector.multi_reduction <add>, %0, %cst [1] : vector<8x256xf32> to vector<8xf32>
    %2 = vector.shape_cast %1 : vector<8xf32> to vector<8x1xf32>
    %cst_1 = arith.constant 3.906250e-03 : f32
    %3 = vector.broadcast %cst_1 : f32 to vector<8x1xf32>
    %4 = arith.mulf %2, %3 : vector<8x1xf32>
    %5 = vector.broadcast %4 : vector<8x1xf32> to vector<8x256xf32>
    %6 = arith.subf %0, %5 : vector<8x256xf32>
    %7 = arith.mulf %6, %6 : vector<8x256xf32>
    %cst_2 = arith.constant dense<0.000000e+00> : vector<8xf32>
    %8 = vector.multi_reduction <add>, %7, %cst_2 [1] : vector<8x256xf32> to vector<8xf32>
    %9 = vector.shape_cast %8 : vector<8xf32> to vector<8x1xf32>
    %cst_3 = arith.constant 3.906250e-03 : f32
    %10 = vector.broadcast %cst_3 : f32 to vector<8x1xf32>
    %11 = arith.mulf %9, %10 : vector<8x1xf32>
    %cst_4 = arith.constant 9.99999974E-6 : f32
    %12 = vector.broadcast %cst_4 : f32 to vector<8x1xf32>
    %13 = arith.addf %11, %12 : vector<8x1xf32>
    %14 = math.rsqrt %13 : vector<8x1xf32>
    %15 = vector.broadcast %14 : vector<8x1xf32> to vector<8x256xf32>
    %16 = arith.mulf %6, %15 : vector<8x256xf32>
    %c0_5 = arith.constant 0 : index
    %c0_6 = arith.constant 0 : index
    %17 = vector.load %arg2[%c0_5, %c0_6] : memref<8x1xf32, #tpu.memory_space<vmem>>, vector<8x1xf32>
    %18 = vector.broadcast %17 : vector<8x1xf32> to vector<8x256xf32>
    %19 = arith.mulf %16, %18 : vector<8x256xf32>
    %c0_7 = arith.constant 0 : index
    %c0_8 = arith.constant 0 : index
    %20 = vector.load %arg3[%c0_7, %c0_8] : memref<8x1xf32, #tpu.memory_space<vmem>>, vector<8x1xf32>
    %21 = vector.broadcast %20 : vector<8x1xf32> to vector<8x256xf32>
    %22 = arith.addf %19, %21 : vector<8x256xf32>
    %c0_9 = arith.constant 0 : index
    %c0_10 = arith.constant 0 : index
    %23 = vector.load %arg4[%c0_9, %c0_10] : memref<8x256xf32, #tpu.memory_space<vmem>>, vector<8x256xf32>
    tpu.vector_store %arg4[%c0_9, %c0_10], %22 {strides = array<i32>} : memref<8x256xf32, #tpu.memory_space<vmem>>, vector<8x256xf32>,
    return
  }
  func.func @transform_0(%arg0: i32) -> (i32, i32) {
    %c0_i32 = arith.constant 0 : i32
    %c0_i32_0 = arith.constant 0 : i32
    return %arg0, %c0_i32 : i32, i32
  }
  func.func @transform_1(%arg0: i32) -> (i32, i32) {
    %c0_i32 = arith.constant 0 : i32
    %c0_i32_0 = arith.constant 0 : i32
    return %arg0, %c0_i32 : i32, i32
  }
  func.func @transform_2(%arg0: i32) -> (i32, i32) {
    %c0_i32 = arith.constant 0 : i32
    %c0_i32_0 = arith.constant 0 : i32
    return %arg0, %c0_i32 : i32, i32
  }
  func.func @transform_3(%arg0: i32) -> (i32, i32) {
    %c0_i32 = arith.constant 0 : i32
    %c0_i32_0 = arith.constant 0 : i32
    return %arg0, %c0_i32 : i32, i32
  }
}

</mosaic_0001>

<llo_original>
// kernel: tpu_custom_call.1
$region0: #{tpu_custom_call.1}
  #allocation0 [shape = 'u32[]', space=smem, size = 0x4, offset = 0x4, fixed_abs, tag = 'smem constant byte address 0x4 - core index']
  #allocation1 [shape = 'u32[72,128]{1,0:T(1,128)}', space=vmem, size = 0x9000, scoped, tag = 'internal scratch']
  %s0 = inlined_call_operand.vmem [shape: f32[8,256], index: 0, kind: input, shape index: {}]
  %s1 = inlined_call_operand.vmem [shape: f32[8,1], index: 1, kind: input, shape index: {}]
  %s2 = inlined_call_operand.vmem [shape: f32[8,1], index: 2, kind: input, shape index: {}]
  %s3 = inlined_call_operand.hbm [shape: f32[8,256], index: 3, kind: output, shape index: {}]
  %s4 = sld [smem:[#allocation0]]
  $region22: #{tpu_custom_call.1} parent=0
    _
  %s6 = ssub.s32 1, %s4
  %s7 = scalar_select 0, %s6, %s4
  $region1: #{tpu_custom_call.1} parent=0
    #allocation2 [shape = 'u8[8192]{0}', space=vmem, size = 0x2000, scoped, tag = 'output window, operand 0, single buffered']
    #allocation3 [shape = 's32[1]{0}', space=sflag, size = 0x4, scoped, tag = 'scoped memory for tpu_custom_call.1']
    %8 = vsyncpa [#allocation3], 0
    // Predicated region
    $region2: #{tpu_custom_call.1} parent=1 // pred_check
      _
    $region3: #{tpu_custom_call.1} parent=1 // pred_check_branch
      %10 = sbr.rel (0) target = $region5
    $region4: #{tpu_custom_call.1} parent=1 // pred_region
      _
    $region5: #{tpu_custom_call.1} parent=1 // pred_fallthru
      _
    // Predicated region
    $region6: #{tpu_custom_call.1} parent=1 // pred_check
      _
    $region7: #{tpu_custom_call.1} parent=1 // pred_check_branch
      %12 = sbr.rel (0) target = $region9
    $region8: #{tpu_custom_call.1} parent=1 // pred_region
      _
    $region9: #{tpu_custom_call.1} parent=1 // pred_fallthru
      _
    // Predicated region
    $region10: #{tpu_custom_call.1} parent=1 // pred_check
      _
    $region11: #{tpu_custom_call.1} parent=1 // pred_check_branch
      %14 = sbr.rel (0) target = $region13
    $region12: #{tpu_custom_call.1} parent=1 // pred_region
      _
    $region13: #{tpu_custom_call.1} parent=1 // pred_fallthru
      _
    %v15 = vld [vmem:[%s0] sm:$0xff]
    %v16 = vld [vmem:[%s0 + $0x8] sm:$0xff]
    %v17 = vadd.f32 %v15, %v16
    %18 = vadd.xlane.f32.xlu0 %v17
    %v19 = vpop.xlane.xlu0 %18
    %v20 = vmul.f32 %v19, 0.00390625
    %v21 = vsub.f32 %v15, %v20
    %v22 = vsub.f32 %v16, %v20
    %v23 = vmul.f32 %v21, %v21
    %v24 = vmul.f32 %v22, %v22
    %v25 = vadd.f32 %v23, %v24
    %26 = vadd.xlane.f32.xlu0 %v25
    %v27 = vpop.xlane.xlu0 %26
    %v28 = vmul.f32 %v27, 0.00390625
    %v29 = vadd.f32 %v28, 1e-05
    %v30 = vrsqrt.pop %v29
    %v31 = vmul.f32 %v30, %v29
    %v32 = vmul.f32 %v31, %v30
    %v33 = vmul.f32 0.5, %v32
    %v34 = vsub.f32 1.5, %v33
    %v35 = vmul.f32 %v30, %v34
    %vm36 = vweird.f32 %v29
    %vm37 = vweird.f32 %v30
    %vm38 = vmor %vm36, %vm37
    %v39 = vsel %vm38, %v30, %v35
    %v40 = vmul.f32 %v21, %v39
    %v41 = vmul.f32 %v22, %v39
    %v42 = vld [vmem:[%s1] sm:$0xff]
    %44 = vset.pattern.permute.xlu0 0
    %45 = vperm.xlu0 %44, %v42
    %v46 = vpop.permute.xlu0 %45
    %v48 = vmul.f32 %v40, %v46
    %v49 = vmul.f32 %v41, %v46
    %v50 = vld [vmem:[%s2] sm:$0xff]
    %52 = vset.pattern.permute.xlu0 0
    %53 = vperm.xlu0 %52, %v50
    %v54 = vpop.permute.xlu0 %53
    %v56 = vadd.f32 %v48, %v54
    %v57 = vadd.f32 %v49, %v54
    %58 = vst [vmem:[#allocation2] sm:$0xff] %v56
    %59 = vst [vmem:[#allocation2 + $0x8] sm:$0xff] %v57
    // Predicated region
    $region14: #{tpu_custom_call.1} parent=1 // pred_check
      _
    $region15: #{tpu_custom_call.1} parent=1 // pred_check_branch
      %61 = sbr.rel (0) target = $region17
    $region16: #{tpu_custom_call.1} parent=1 // pred_region
      %63 = vsyncadd [#allocation3], 0
      %s65 = sshll.u32 [#allocation2], 4
      %s66 = int_to_ptr.vmem [resolvable:$true] %s65
      %s67 = sshll.u32 %s3, 4
      %s68 = int_to_ptr.hbm [resolvable:$true] %s67
      %70 = dma.vmem_to_hbm [thread:$0]  %s66, 256, %s68, [#allocation3]
    $region17: #{tpu_custom_call.1} parent=1 // pred_fallthru
      _
    // Predicated region
    $region18: #{tpu_custom_call.1} parent=1 // pred_check
      _
    $region19: #{tpu_custom_call.1} parent=1 // pred_check_branch
      %72 = sbr.rel (0) target = $region21
    $region20: #{tpu_custom_call.1} parent=1 // pred_region
      %74 = dma.done [#allocation3], 256
    $region21: #{tpu_custom_call.1} parent=1 // pred_fallthru
      _
    %75 = vsyncpa [#allocation3], 1

</llo_original>
